<compile_context>
chip_gen: v7x
topology: tpu7x:2x2x1
jax: 0.10.0
libtpu: 0.0.40
codegen_flags: <defaults>
</compile_context>

<pallas_src>
import jax
import jax.numpy as jnp
from jax.experimental import pallas as pl
from jax.experimental.pallas import tpu as pltpu

_LANE = 128                       # vreg lane width (last dim must be lane-dense)
_SUBLANE = 8                      # f32 sublane granularity
_TARGET_BLOCK_BYTES = 1 << 20     # ~1 MiB per tensor per grid step


def _fused_copy_kernel(a_ref, b_ref, oa_ref, ob_ref):
    # Identity: the module does no compute, just forwards the tensors.
    oa_ref[...] = a_ref[...]
    ob_ref[...] = b_ref[...]


def rpn_cls_loss_input(x):
    """Equivalent of RpnClsLossInput.forward.

    Args:
      x: sequence whose first two elements are cls_scores and bbox_preds
         (NCHW tensors).
    Returns:
      (cls_scores, bbox_preds), copied through a single fused Pallas kernel.
    """
    cls_scores = x[0]
    bbox_preds = x[1]
    tensors = (cls_scores, bbox_preds)

    # Choose one shared grid so the *largest* tensor moves ~1 MiB per step.
    max_bytes = max(int(t.size) * t.dtype.itemsize for t in tensors)
    grid = max(1, int(pl.cdiv(max_bytes, _TARGET_BLOCK_BYTES)))

    flats = []
    in_specs = []
    out_shapes = []
    out_specs = []
    for t in tensors:
        n_elem = int(t.size)
        # Pad so rows is an exact multiple of (grid * sublane): every block is
        # fully in-bounds and lane/sublane aligned.
        chunk = grid * _SUBLANE * _LANE
        padded = ((n_elem + chunk - 1) // chunk) * chunk
        flat = t.reshape(-1)
        if padded != n_elem:
            flat = jnp.pad(flat, (0, padded - n_elem))
        rows = padded // _LANE
        block_rows = rows // grid
        flats.append(flat.reshape(rows, _LANE))
        in_specs.append(pl.BlockSpec((block_rows, _LANE), lambda i: (i, 0)))
        out_shapes.append(jax.ShapeDtypeStruct((rows, _LANE), t.dtype))
        out_specs.append(pl.BlockSpec((block_rows, _LANE), lambda i: (i, 0)))

    outs = pl.pallas_call(
        _fused_copy_kernel,
        out_shape=tuple(out_shapes),
        grid_spec=pltpu.PrefetchScalarGridSpec(
            num_scalar_prefetch=0,
            grid=(grid,),
            in_specs=in_specs,
            out_specs=tuple(out_specs),
        ),
        compiler_params=pltpu.CompilerParams(
            dimension_semantics=("parallel",),
            # ~1 MiB x 4 buffers x 2 (double buffering) = 8 MiB; 32 MiB limit
            # is safe on v5e/v6e (128 MiB) and v7x (64 MiB physical).
            vmem_limit_bytes=32 * 1024 * 1024,
        ),
    )(*flats)

    results = []
    for t, o in zip(tensors, outs):
        results.append(o.reshape(-1)[: int(t.size)].reshape(t.shape))
    return tuple(results)


if __name__ == "__main__":
    key = jax.random.PRNGKey(0)
    k_cls, k_bbox = jax.random.split(key)

    # Typical RPN head outputs (small synthetic shapes):
    #   cls_scores: (N, num_anchors * 1, H, W)
    #   bbox_preds: (N, num_anchors * 4, H, W)
    num_anchors = 4
    cls_scores = jax.random.normal(k_cls, (2, num_anchors * 1, 16, 16),
                                   dtype=jnp.float32)
    bbox_preds = jax.random.normal(k_bbox, (2, num_anchors * 4, 16, 16),
                                   dtype=jnp.float32)

    out_cls, out_bbox = rpn_cls_loss_input([cls_scores, bbox_preds])
    jax.block_until_ready(out_cls)
    jax.block_until_ready(out_bbox)

    assert out_cls.shape == cls_scores.shape
    assert out_bbox.shape == bbox_preds.shape
    assert jnp.array_equal(out_cls, cls_scores)
    assert jnp.array_equal(out_bbox, bbox_preds)

    print("KERNEL_OK")
</pallas_src>

<mosaic_0001>
module attributes {stable_mosaic.version = 11 : i64} {
  func.func @_fused_copy_kernel(%arg0: i32, %arg1: memref<16x128xf32, #tpu.memory_space<vmem>>, %arg2: memref<64x128xf32, #tpu.memory_space<vmem>>, %arg3: memref<16x128xf32, #tpu.memory_space<vmem>>, %arg4: memref<64x128xf32, #tpu.memory_space<vmem>>) attributes {dimension_semantics = [#tpu.dimension_semantics<parallel>], iteration_bounds = array<i64: 1>, scalar_prefetch = 0 : i64, scratch_operands = 0 : i64, tpu.core_type = #tpu.core_type<tc>, window_params = [{transform_indices = @transform_0, window_bounds = array<i64: 16, 128>}, {transform_indices = @transform_1, window_bounds = array<i64: 64, 128>}, {transform_indices = @transform_2, window_bounds = array<i64: 16, 128>}, {transform_indices = @transform_3, window_bounds = array<i64: 64, 128>}]} {
    %c0 = arith.constant 0 : index
    %c0_0 = arith.constant 0 : index
    %0 = vector.load %arg1[%c0, %c0_0] : memref<16x128xf32, #tpu.memory_space<vmem>>, vector<16x128xf32>
    %c0_1 = arith.constant 0 : index
    %c0_2 = arith.constant 0 : index
    %1 = vector.load %arg3[%c0_1, %c0_2] : memref<16x128xf32, #tpu.memory_space<vmem>>, vector<16x128xf32>
    tpu.vector_store %arg3[%c0_1, %c0_2], %0 {strides = array<i32>} : memref<16x128xf32, #tpu.memory_space<vmem>>, vector<16x128xf32>,
    %c0_3 = arith.constant 0 : index
    %c0_4 = arith.constant 0 : index
    %2 = vector.load %arg2[%c0_3, %c0_4] : memref<64x128xf32, #tpu.memory_space<vmem>>, vector<64x128xf32>
    %c0_5 = arith.constant 0 : index
    %c0_6 = arith.constant 0 : index
    %3 = vector.load %arg4[%c0_5, %c0_6] : memref<64x128xf32, #tpu.memory_space<vmem>>, vector<64x128xf32>
    tpu.vector_store %arg4[%c0_5, %c0_6], %2 {strides = array<i32>} : memref<64x128xf32, #tpu.memory_space<vmem>>, vector<64x128xf32>,
    return
  }
  func.func @transform_0(%arg0: i32) -> (i32, i32) {
    %c0_i32 = arith.constant 0 : i32
    %c0_i32_0 = arith.constant 0 : i32
    return %arg0, %c0_i32 : i32, i32
  }
  func.func @transform_1(%arg0: i32) -> (i32, i32) {
    %c0_i32 = arith.constant 0 : i32
    %c0_i32_0 = arith.constant 0 : i32
    return %arg0, %c0_i32 : i32, i32
  }
  func.func @transform_2(%arg0: i32) -> (i32, i32) {
    %c0_i32 = arith.constant 0 : i32
    %c0_i32_0 = arith.constant 0 : i32
    return %arg0, %c0_i32 : i32, i32
  }
  func.func @transform_3(%arg0: i32) -> (i32, i32) {
    %c0_i32 = arith.constant 0 : i32
    %c0_i32_0 = arith.constant 0 : i32
    return %arg0, %c0_i32 : i32, i32
  }
}

</mosaic_0001>

<llo_original>
// kernel: tpu_custom_call.1
$region0: #{tpu_custom_call.1}
  #allocation0 [shape = 'u32[]', space=smem, size = 0x4, offset = 0x4, fixed_abs, tag = 'smem constant byte address 0x4 - core index']
  #allocation1 [shape = 'u32[144,128]{1,0:T(1,128)}', space=vmem, size = 0x12000, scoped, tag = 'internal scratch']
  %s0 = inlined_call_operand.hbm [shape: f32[16,128], index: 0, kind: input, shape index: {}]
  %s1 = inlined_call_operand.hbm [shape: f32[64,128], index: 1, kind: input, shape index: {}]
  %s2 = inlined_call_operand.hbm [shape: f32[16,128], index: 2, kind: output, shape index: {0}]
  %s3 = inlined_call_operand.hbm [shape: f32[64,128], index: 3, kind: output, shape index: {1}]
  %4 = xla_tuple %s2, %s3
  %s5 = sld [smem:[#allocation0]]
  $region34: #{tpu_custom_call.1} parent=0
    _
  %s7 = ssub.s32 1, %s5
  %s8 = scalar_select 0, %s7, %s5
  $region1: #{tpu_custom_call.1} parent=0
    #allocation2 [shape = 'u8[8192]{0}', space=vmem, size = 0x2000, scoped, tag = 'input window, operand 0, single buffered']
    #allocation3 [shape = 's32[1]{0}', space=sflag, size = 0x4, scoped, tag = 'scoped memory for tpu_custom_call.1']
    #allocation4 [shape = 's32[1]{0}', space=sflag, size = 0x4, scoped, tag = 'scoped memory for tpu_custom_call.1']
    #allocation5 [shape = 'u8[32768]{0}', space=vmem, size = 0x8000, scoped, tag = 'input window, operand 1, single buffered']
    #allocation6 [shape = 's32[1]{0}', space=sflag, size = 0x4, scoped, tag = 'scoped memory for tpu_custom_call.1']
    #allocation7 [shape = 'u8[8192]{0}', space=vmem, size = 0x2000, scoped, tag = 'output window, operand 0, single buffered']
    #allocation8 [shape = 'u8[32768]{0}', space=vmem, size = 0x8000, scoped, tag = 'output window, operand 1, single buffered']
    #allocation9 [shape = 's32[1]{0}', space=sflag, size = 0x4, scoped, tag = 'scoped memory for tpu_custom_call.1']
    %9 = vsyncpa [#allocation3], 0
    %10 = vsyncpa [#allocation6], 0
    %11 = vsyncpa [#allocation4], 0
    %12 = vsyncpa [#allocation9], 0
    // Predicated region
    $region2: #{tpu_custom_call.1} parent=1 // pred_check
      _
    $region3: #{tpu_custom_call.1} parent=1 // pred_check_branch
      %14 = sbr.rel (0) target = $region5
    $region4: #{tpu_custom_call.1} parent=1 // pred_region
      %s16 = ssub.s32 256, 256
      %17 = vsyncadd [#allocation3], %s16
      %s18 = sshll.u32 [#allocation2], 4
      %s19 = int_to_ptr.vmem [resolvable:$true] %s18
      %24 = dma.hbm_to_vmem [thread:$0]  %s0, 256, %s19, [#allocation3], 128, 128, 8
    $region5: #{tpu_custom_call.1} parent=1 // pred_fallthru
      _
    // Predicated region
    $region6: #{tpu_custom_call.1} parent=1 // pred_check
      _
    $region7: #{tpu_custom_call.1} parent=1 // pred_check_branch
      %26 = sbr.rel (0) target = $region9
    $region8: #{tpu_custom_call.1} parent=1 // pred_region
      %s28 = ssub.s32 1024, 1024
      %29 = vsyncadd [#allocation6], %s28
      %s30 = sshll.u32 [#allocation5], 4
      %s31 = int_to_ptr.vmem [resolvable:$true] %s30
      %36 = dma.hbm_to_vmem [thread:$0]  %s1, 1024, %s31, [#allocation6], 128, 128, 8
    $region9: #{tpu_custom_call.1} parent=1 // pred_fallthru
      _
    // Predicated region
    $region10: #{tpu_custom_call.1} parent=1 // pred_check
      _
    $region11: #{tpu_custom_call.1} parent=1 // pred_check_branch
      %38 = sbr.rel (0) target = $region13
    $region12: #{tpu_custom_call.1} parent=1 // pred_region
      %39 = dma.done [#allocation3], 256
    $region13: #{tpu_custom_call.1} parent=1 // pred_fallthru
      _
    // Predicated region
    $region14: #{tpu_custom_call.1} parent=1 // pred_check
      _
    $region15: #{tpu_custom_call.1} parent=1 // pred_check_branch
      %41 = sbr.rel (0) target = $region17
    $region16: #{tpu_custom_call.1} parent=1 // pred_region
      %42 = dma.done [#allocation6], 1024
    $region17: #{tpu_custom_call.1} parent=1 // pred_fallthru
      _
    %v43 = vld [vmem:[#allocation2] sm:$0xff]
    %v44 = vld [vmem:[#allocation2 + $0x8] sm:$0xff]
    %45 = vst [vmem:[#allocation7] sm:$0xff] %v43
    %46 = vst [vmem:[#allocation7 + $0x8] sm:$0xff] %v44
    %v47 = vld [vmem:[#allocation5] sm:$0xff]
    %v48 = vld [vmem:[#allocation5 + $0x8] sm:$0xff]
    %v49 = vld [vmem:[#allocation5 + $0x10] sm:$0xff]
    %v50 = vld [vmem:[#allocation5 + $0x18] sm:$0xff]
    %v51 = vld [vmem:[#allocation5 + $0x20] sm:$0xff]
    %v52 = vld [vmem:[#allocation5 + $0x28] sm:$0xff]
    %v53 = vld [vmem:[#allocation5 + $0x30] sm:$0xff]
    %v54 = vld [vmem:[#allocation5 + $0x38] sm:$0xff]
    %55 = vst [vmem:[#allocation8] sm:$0xff] %v47
    %56 = vst [vmem:[#allocation8 + $0x8] sm:$0xff] %v48
    %57 = vst [vmem:[#allocation8 + $0x10] sm:$0xff] %v49
    %58 = vst [vmem:[#allocation8 + $0x18] sm:$0xff] %v50
    %59 = vst [vmem:[#allocation8 + $0x20] sm:$0xff] %v51
    %60 = vst [vmem:[#allocation8 + $0x28] sm:$0xff] %v52
    %61 = vst [vmem:[#allocation8 + $0x30] sm:$0xff] %v53
    %62 = vst [vmem:[#allocation8 + $0x38] sm:$0xff] %v54
    // Predicated region
    $region18: #{tpu_custom_call.1} parent=1 // pred_check
      _
    $region19: #{tpu_custom_call.1} parent=1 // pred_check_branch
      %64 = sbr.rel (0) target = $region21
    $region20: #{tpu_custom_call.1} parent=1 // pred_region
      %s66 = ssub.s32 256, 256
      %67 = vsyncadd [#allocation4], %s66
      %s68 = sshll.u32 [#allocation7], 4
      %s69 = int_to_ptr.vmem [resolvable:$true] %s68
      %74 = dma.vmem_to_hbm [thread:$0]  %s69, 256, %s2, [#allocation4], 128, 128, 8
    $region21: #{tpu_custom_call.1} parent=1 // pred_fallthru
      _
    // Predicated region
    $region22: #{tpu_custom_call.1} parent=1 // pred_check
      _
    $region23: #{tpu_custom_call.1} parent=1 // pred_check_branch
      %76 = sbr.rel (0) target = $region25
    $region24: #{tpu_custom_call.1} parent=1 // pred_region
      %s78 = ssub.s32 1024, 1024
      %79 = vsyncadd [#allocation9], %s78
      %s80 = sshll.u32 [#allocation8], 4
      %s81 = int_to_ptr.vmem [resolvable:$true] %s80
      %86 = dma.vmem_to_hbm [thread:$0]  %s81, 1024, %s3, [#allocation9], 128, 128, 8
    $region25: #{tpu_custom_call.1} parent=1 // pred_fallthru
      _
    // Predicated region
    $region26: #{tpu_custom_call.1} parent=1 // pred_check
      _
    $region27: #{tpu_custom_call.1} parent=1 // pred_check_branch
      %88 = sbr.rel (0) target = $region29
    $region28: #{tpu_custom_call.1} parent=1 // pred_region
      %89 = dma.done [#allocation4], 256
    $region29: #{tpu_custom_call.1} parent=1 // pred_fallthru
      _
    // Predicated region
    $region30: #{tpu_custom_call.1} parent=1 // pred_check
      _
    $region31: #{tpu_custom_call.1} parent=1 // pred_check_branch
      %91 = sbr.rel (0) target = $region33
    $region32: #{tpu_custom_call.1} parent=1 // pred_region
      %92 = dma.done [#allocation9], 1024
    $region33: #{tpu_custom_call.1} parent=1 // pred_fallthru
      _
    %93 = vsyncpa [#allocation3], 1
    %94 = vsyncpa [#allocation6], 1
    %95 = vsyncpa [#allocation4], 1
    %96 = vsyncpa [#allocation9], 1

</llo_original>
